<compile_context>
chip_gen: v5e
topology: v5e:2x2
jax: 0.10.0
libtpu: 0.0.40
codegen_flags: <defaults>
</compile_context>

<pallas_src>
import math

import jax
import jax.numpy as jnp
from jax.experimental import pallas as pl
from jax.experimental.pallas import tpu as pltpu


def _cdiv(a, b):
    return -(-a // b)


def _round_up(x, m):
    return ((x + m - 1) // m) * m


def _sublane_align(dtype):
    # f32 -> 8 sublanes, bf16/f16 -> 16, int8/bool -> 32 (sublane packing).
    return {4: 8, 2: 16, 1: 32}.get(jnp.dtype(dtype).itemsize, 8)


def _make_bce_sum_kernel(rows, tm, S, need_mask):
    """Grid (P, S); accumulates per-p partial sums into a resident (8, L) block."""

    def kernel(pred_ref, tgt_ref, acc_ref):
        p = pl.program_id(0)
        s = pl.program_id(1)

        @pl.when(s == 0)
        def _():
            acc_ref[...] = jnp.zeros_like(acc_ref)

        x = pred_ref[...].astype(jnp.float32)
        y = tgt_ref[...].astype(jnp.float32)
        # Numerically stable BCE-with-logits (pos_weight=None):
        #   loss = max(x, 0) - x*y + log1p(exp(-|x|))
        loss = jnp.maximum(x, 0.0) - x * y + jnp.log1p(jnp.exp(-jnp.abs(x)))

        if need_mask:
            # Rows past the real array (partial / clamped boundary blocks) hold
            # unspecified data; zero them with a pure-VPU select.  rows/tm/S are
            # static Python ints baked in at trace time (no scalar prefetch needed).
            row0 = (p * S + s) * tm
            row_ids = jax.lax.broadcasted_iota(jnp.int32, loss.shape, 0)
            loss = jnp.where(row0 + row_ids < rows, loss, 0.0)

        m, lanes = loss.shape
        # VPU-only partial reduce over sublane groups of 8 into the resident (8, L)
        # accumulator; cross-lane reduce + mean are deferred to the wrapper.
        acc_ref[...] += jnp.sum(loss.reshape(m // 8, 8, lanes), axis=0)

    return kernel


def bce_logits_loss(pred, target, *, block_bytes=4 * 1024 * 1024, n_parallel=1):
    assert pred.shape == target.shape
    assert pred.ndim >= 2
    # ll.sum(dim=(-2,-1)).mean()  ==  total_sum / prod(leading dims)
    m_maps = int(math.prod(pred.shape[:-2])) if pred.ndim > 2 else 1
    total = int(math.prod(pred.shape))

    align = max(_sublane_align(pred.dtype), _sublane_align(target.dtype))
    one_itemsize = max(jnp.dtype(pred.dtype).itemsize, jnp.dtype(target.dtype).itemsize)
    sum_itemsize = jnp.dtype(pred.dtype).itemsize + jnp.dtype(target.dtype).itemsize

    # Lane-dense width L such that reshape(rows, L) needs no padding (zero-copy view).
    L = None
    for cand in (512, 256, 128):
        if total % cand == 0 and (total // cand) >= align:
            L = cand
            break

    p_flat = pred.reshape(-1)
    t_flat = target.reshape(-1)
    if L is None:
        # Rare fallback (numel not a multiple of 128, or micro input): pad with a
        # zero-loss sentinel (exp(-1e4) underflows in f32, loss term is exactly 0).
        # TODO(synk): this path materializes one padded copy; only hit for shapes
        # where numel % 128 != 0 or numel < align*128, so the copy is negligible.
        L = 128
        rows = _round_up(max(_cdiv(total, L), align), align)
        pad = rows * L - total
        p_flat = jnp.pad(p_flat, (0, pad), constant_values=-1e4)
        t_flat = jnp.pad(t_flat, (0, pad), constant_values=0)
    else:
        rows = total // L

    P = max(1, int(n_parallel))
    # Row tile from a ~block_bytes-per-input budget, aligned and within the rows.
    tm_budget = max(align, (block_bytes // (L * one_itemsize)) // align * align)
    per_core = _round_up(_cdiv(rows, P), align)
    max_tm = max(align, (rows // align) * align)
    tm = min(tm_budget, per_core, max_tm)
    S = _cdiv(rows, P * tm)
    need_mask = P * S * tm > rows
    max_block = _cdiv(rows, tm) - 1  # clamp so no block starts fully out of range

    p2 = p_flat.reshape(rows, L)
    t2 = t_flat.reshape(rows, L)

    def in_index_map(p, s):
        return (jnp.minimum(p * S + s, max_block), 0)

    blk_bytes = tm * L * sum_itemsize                 # one step's input blocks
    vmem_limit = 2 * blk_bytes + (8 << 20)            # double-buffered + headroom
    in_bytes = rows * L * sum_itemsize
    out_bytes = P * 8 * L * 4

    partials = pl.pallas_call(
        _make_bce_sum_kernel(rows, tm, S, need_mask),
        out_shape=jax.ShapeDtypeStruct((P * 8, L), jnp.float32),
        grid_spec=pltpu.PrefetchScalarGridSpec(
            num_scalar_prefetch=0,
            grid=(P, S),
            in_specs=[
                pl.BlockSpec((tm, L), in_index_map),
                pl.BlockSpec((tm, L), in_index_map),
            ],
            out_specs=pl.BlockSpec((8, L), lambda p, s: (p, 0)),
        ),
        compiler_params=pltpu.CompilerParams(
            dimension_semantics=("parallel", "arbitrary"),
            vmem_limit_bytes=int(vmem_limit),
        ),
        cost_estimate=pl.CostEstimate(
            flops=6 * total,
            transcendentals=2 * total,
            bytes_accessed=in_bytes + out_bytes,
        ),
    )(p2, t2)

    return jnp.sum(partials) / jnp.float32(m_maps)


def bce_logits_loss_ref(pred, target):
    x = pred.astype(jnp.float32)
    y = target.astype(jnp.float32)
    ll = jnp.maximum(x, 0.0) - x * y + jnp.log1p(jnp.exp(-jnp.abs(x)))
    ll = ll.sum(axis=(-2, -1))
    return ll.mean()


if __name__ == "__main__":
    key = jax.random.PRNGKey(0)

    def run_check(shape, k):
        k1, k2 = jax.random.split(k)
        pred = jax.random.normal(k1, shape, dtype=jnp.float32)
        target = (jax.random.uniform(k2, shape) > 0.5).astype(jnp.float32)
        out = jax.block_until_ready(bce_logits_loss(pred, target))
        ref = bce_logits_loss_ref(pred, target)
        assert jnp.allclose(out, ref, rtol=1e-4, atol=1e-4), (shape, out, ref)

    # Primary case (zero-copy path, no masking): (2, 4, 16, 16).
    run_check((2, 4, 16, 16), jax.random.fold_in(key, 0))
    # Zero-copy path with partial final block (in-kernel row mask).
    run_check((3, 3, 16, 24), jax.random.fold_in(key, 1))
    # Pad fallback path (numel not a multiple of 128).
    run_check((2, 3, 7, 9), jax.random.fold_in(key, 2))

    print("KERNEL_OK")
</pallas_src>

<mosaic_0001>
module attributes {stable_mosaic.version = 11 : i64} {
  func.func @kernel(%arg0: i32, %arg1: i32, %arg2: memref<8x256xf32, #tpu.memory_space<vmem>>, %arg3: memref<8x256xf32, #tpu.memory_space<vmem>>, %arg4: memref<8x256xf32, #tpu.memory_space<vmem>>) attributes {dimension_semantics = [#tpu.dimension_semantics<parallel>, #tpu.dimension_semantics<arbitrary>], iteration_bounds = array<i64: 1, 1>, scalar_prefetch = 0 : i64, scratch_operands = 0 : i64, tpu.core_type = #tpu.core_type<tc>, window_params = [{transform_indices = @transform_0, window_bounds = array<i64: 8, 256>}, {transform_indices = @transform_1, window_bounds = array<i64: 8, 256>}, {transform_indices = @transform_2, window_bounds = array<i64: 8, 256>}]} {
    %c0_i32 = arith.constant 0 : i32
    %0 = arith.cmpi eq, %arg1, %c0_i32 : i32
    %1 = arith.extui %0 : i1 to i32
    %c0_i32_0 = arith.constant 0 : i32
    %2 = arith.cmpi ne, %1, %c0_i32_0 : i32
    scf.if %2 {
      %cst_10 = arith.constant 0.000000e+00 : f32
      %20 = vector.broadcast %cst_10 : f32 to vector<8x256xf32>
      %c0_11 = arith.constant 0 : index
      %c0_12 = arith.constant 0 : index
      %21 = vector.load %arg4[%c0_11, %c0_12] : memref<8x256xf32, #tpu.memory_space<vmem>>, vector<8x256xf32>
      tpu.vector_store %arg4[%c0_11, %c0_12], %20 {strides = array<i32>} : memref<8x256xf32, #tpu.memory_space<vmem>>, vector<8x256xf32>,
    } else {
    }
    %c0 = arith.constant 0 : index
    %c0_1 = arith.constant 0 : index
    %3 = vector.load %arg2[%c0, %c0_1] : memref<8x256xf32, #tpu.memory_space<vmem>>, vector<8x256xf32>
    %c0_2 = arith.constant 0 : index
    %c0_3 = arith.constant 0 : index
    %4 = vector.load %arg3[%c0_2, %c0_3] : memref<8x256xf32, #tpu.memory_space<vmem>>, vector<8x256xf32>
    %cst = arith.constant 0.000000e+00 : f32
    %5 = vector.broadcast %cst : f32 to vector<8x256xf32>
    %6 = arith.maximumf %3, %5 : vector<8x256xf32>
    %7 = arith.mulf %3, %4 : vector<8x256xf32>
    %8 = arith.subf %6, %7 : vector<8x256xf32>
    %9 = math.absf %3 : vector<8x256xf32>
    %cst_4 = arith.constant 0.000000e+00 : f32
    %10 = vector.broadcast %cst_4 : f32 to vector<8x256xf32>
    %11 = arith.subf %10, %9 : vector<8x256xf32>
    %12 = math.exp %11 : vector<8x256xf32>
    %13 = math.log1p %12 : vector<8x256xf32>
    %14 = arith.addf %8, %13 : vector<8x256xf32>
    %c0_5 = arith.constant 0 : index
    %c0_6 = arith.constant 0 : index
    %15 = vector.load %arg4[%c0_5, %c0_6] : memref<8x256xf32, #tpu.memory_space<vmem>>, vector<8x256xf32>
    %16 = vector.shape_cast %14 : vector<8x256xf32> to vector<1x8x256xf32>
    %cst_7 = arith.constant dense<0.000000e+00> : vector<8x256xf32>
    %17 = vector.multi_reduction <add>, %16, %cst_7 [0] : vector<1x8x256xf32> to vector<8x256xf32>
    %18 = arith.addf %15, %17 : vector<8x256xf32>
    %c0_8 = arith.constant 0 : index
    %c0_9 = arith.constant 0 : index
    %19 = vector.load %arg4[%c0_8, %c0_9] : memref<8x256xf32, #tpu.memory_space<vmem>>, vector<8x256xf32>
    tpu.vector_store %arg4[%c0_8, %c0_9], %18 {strides = array<i32>} : memref<8x256xf32, #tpu.memory_space<vmem>>, vector<8x256xf32>,
    return
  }
  func.func @transform_0(%arg0: i32, %arg1: i32) -> (i32, i32) {
    %c1_i32 = arith.constant 1 : i32
    %0 = arith.muli %arg0, %c1_i32 : i32
    %1 = arith.addi %0, %arg1 : i32
    %c0_i32 = arith.constant 0 : i32
    %2 = arith.minsi %1, %c0_i32 : i32
    %c0_i32_0 = arith.constant 0 : i32
    %c0_i32_1 = arith.constant 0 : i32
    return %2, %c0_i32_0 : i32, i32
  }
  func.func @transform_1(%arg0: i32, %arg1: i32) -> (i32, i32) {
    %c1_i32 = arith.constant 1 : i32
    %0 = arith.muli %arg0, %c1_i32 : i32
    %1 = arith.addi %0, %arg1 : i32
    %c0_i32 = arith.constant 0 : i32
    %2 = arith.minsi %1, %c0_i32 : i32
    %c0_i32_0 = arith.constant 0 : i32
    %c0_i32_1 = arith.constant 0 : i32
    return %2, %c0_i32_0 : i32, i32
  }
  func.func @transform_2(%arg0: i32, %arg1: i32) -> (i32, i32) {
    %c0_i32 = arith.constant 0 : i32
    %c0_i32_0 = arith.constant 0 : i32
    return %arg0, %c0_i32 : i32, i32
  }
}

</mosaic_0001>

<llo_original>
// kernel: tpu_custom_call.1
$region0: #{tpu_custom_call.1}
  #allocation0 [shape = 'u32[]', space=smem, size = 0x4, offset = 0x4, fixed_abs, tag = 'smem constant byte address 0x4 - core index']
  #allocation1 [shape = 'u32[72,128]{1,0:T(1,128)}', space=vmem, size = 0x9000, scoped, tag = 'internal scratch']
  %s0 = inlined_call_operand.hbm [shape: f32[8,256], index: 0, kind: input, shape index: {}]
  %s1 = inlined_call_operand.hbm [shape: f32[8,256], index: 1, kind: input, shape index: {}]
  %s2 = inlined_call_operand.hbm [shape: f32[8,256], index: 2, kind: output, shape index: {}]
  %s3 = sld [smem:[#allocation0]]
  $region30: #{tpu_custom_call.1} parent=0
    _
  %s5 = ssub.s32 1, %s3
  %s6 = scalar_select 0, %s5, %s3
  $region1: #{tpu_custom_call.1} parent=0
    #allocation2 [shape = 'u8[8192]{0}', space=vmem, size = 0x2000, scoped, tag = 'input window, operand 0, single buffered']
    #allocation3 [shape = 's32[1]{0}', space=sflag, size = 0x4, scoped, tag = 'scoped memory for tpu_custom_call.1']
    #allocation4 [shape = 's32[1]{0}', space=sflag, size = 0x4, scoped, tag = 'scoped memory for tpu_custom_call.1']
    #allocation5 [shape = 'u8[8192]{0}', space=vmem, size = 0x2000, scoped, tag = 'input window, operand 1, single buffered']
    #allocation6 [shape = 's32[1]{0}', space=sflag, size = 0x4, scoped, tag = 'scoped memory for tpu_custom_call.1']
    #allocation7 [shape = 'u8[8192]{0}', space=vmem, size = 0x2000, scoped, tag = 'output window, operand 0, single buffered']
    %7 = vsyncpa [#allocation3], 0
    %8 = vsyncpa [#allocation6], 0
    %9 = vsyncpa [#allocation4], 0
    // Predicated region
    $region2: #{tpu_custom_call.1} parent=1 // pred_check
      _
    $region3: #{tpu_custom_call.1} parent=1 // pred_check_branch
      %11 = sbr.rel (0) target = $region5
    $region4: #{tpu_custom_call.1} parent=1 // pred_region
      %s12 = sadd.s32 0, 0
      %p13 = scmp.lt.s32.totalorder %s12, 0
      %s14 = scalar_select %p13, %s12, 0
      %16 = vsyncadd [#allocation3], 0
      %s17 = smul.addr %s14, 2
      %s18 = smul.addr %s17, 8
      %s19 = scalar_lea.hbm %s0, %s18
      %s21 = sshll.u32 %s19, 4
      %s22 = int_to_ptr.hbm [resolvable:$true] %s21
      %s23 = sshll.u32 [#allocation2], 4
      %s24 = int_to_ptr.vmem [resolvable:$true] %s23
      %26 = dma.hbm_to_vmem [thread:$0]  %s22, 256, %s24, [#allocation3]
    $region5: #{tpu_custom_call.1} parent=1 // pred_fallthru
      _
    // Predicated region
    $region6: #{tpu_custom_call.1} parent=1 // pred_check
      _
    $region7: #{tpu_custom_call.1} parent=1 // pred_check_branch
      %28 = sbr.rel (0) target = $region9
    $region8: #{tpu_custom_call.1} parent=1 // pred_region
      %s29 = sadd.s32 0, 0
      %p30 = scmp.lt.s32.totalorder %s29, 0
      %s31 = scalar_select %p30, %s29, 0
      %33 = vsyncadd [#allocation6], 0
      %s34 = smul.addr %s31, 2
      %s35 = smul.addr %s34, 8
      %s36 = scalar_lea.hbm %s1, %s35
      %s38 = sshll.u32 %s36, 4
      %s39 = int_to_ptr.hbm [resolvable:$true] %s38
      %s40 = sshll.u32 [#allocation5], 4
      %s41 = int_to_ptr.vmem [resolvable:$true] %s40
      %43 = dma.hbm_to_vmem [thread:$0]  %s39, 256, %s41, [#allocation6]
    $region9: #{tpu_custom_call.1} parent=1 // pred_fallthru
      _
    // Predicated region
    $region10: #{tpu_custom_call.1} parent=1 // pred_check
      _
    $region11: #{tpu_custom_call.1} parent=1 // pred_check_branch
      %45 = sbr.rel (0) target = $region13
    $region12: #{tpu_custom_call.1} parent=1 // pred_region
      %47 = dma.done [#allocation3], 256
    $region13: #{tpu_custom_call.1} parent=1 // pred_fallthru
      _
    // Predicated region
    $region14: #{tpu_custom_call.1} parent=1 // pred_check
      _
    $region15: #{tpu_custom_call.1} parent=1 // pred_check_branch
      %49 = sbr.rel (0) target = $region17
    $region16: #{tpu_custom_call.1} parent=1 // pred_region
      %51 = dma.done [#allocation6], 256
    $region17: #{tpu_custom_call.1} parent=1 // pred_fallthru
      _
    %s52 = sadd.s32 0, 0
    %p53 = scmp.lt.s32.totalorder %s52, 0
    %s54 = scalar_select %p53, %s52, 0
    %s55 = sadd.s32 0, 0
    %p56 = scmp.lt.s32.totalorder %s55, 0
    %s57 = scalar_select %p56, %s55, 0
    %p58 = scmp.eq.s32.totalorder 0, 0
    // Predicated region
    $region18: #{tpu_custom_call.1} parent=1 // pred_check
      %p59 = pneg %p58
    $region19: #{tpu_custom_call.1} parent=1 // pred_check_branch
      %61 = sbr.rel (%p59) target = $region21
    $region20: #{tpu_custom_call.1} parent=1 // pred_region
      %62 = vst [vmem:[#allocation7] sm:$0xff] 0.0
      %63 = vst [vmem:[#allocation7 + $0x8] sm:$0xff] 0.0
    $region21: #{tpu_custom_call.1} parent=1 // pred_fallthru
      _
    %v64 = vld [vmem:[#allocation2] sm:$0xff]
    %v65 = vld [vmem:[#allocation2 + $0x8] sm:$0xff]
    %v66 = vld [vmem:[#allocation5] sm:$0xff]
    %v67 = vld [vmem:[#allocation5 + $0x8] sm:$0xff]
    %v68 = vmax.f32 %v64, 0.0
    %v69 = vmax.f32 %v65, 0.0
    %v70 = vmul.f32 %v64, %v66
    %v71 = vmul.f32 %v65, %v67
    %v72 = vsub.f32 %v68, %v70
    %v73 = vsub.f32 %v69, %v71
    %v74 = vand.u32 2147483647, %v64
    %v75 = vand.u32 2147483647, %v65
    %v76 = vsub.f32 0.0, %v74
    %v77 = vsub.f32 0.0, %v75
    %v78 = vmul.f32 %v76, 1.442695
    %v79 = vpow.pop %v78
    %v80 = vmul.f32 %v77, 1.442695
    %v81 = vpow.pop %v80
    %v82 = vadd.f32 %v79, 1.0
    %v83 = vlog2.pop %v82
    %v84 = vmul.f32 %v83, 0.6931472
    %v85 = vmul.f32 -0.5, %v79
    %v86 = vadd.f32 %v85, 1.0
    %v87 = vmul.f32 %v86, %v79
    %v88 = vand.u32 2147483647, %v79
    %vm89 = vcmp.lt.f32.partialorder %v88, 0.0004427343
    %v90 = vsel %vm89, %v87, %v84
    %v91 = vadd.f32 %v81, 1.0
    %v92 = vlog2.pop %v91
    %v93 = vmul.f32 %v92, 0.6931472
    %v94 = vmul.f32 -0.5, %v81
    %v95 = vadd.f32 %v94, 1.0
    %v96 = vmul.f32 %v95, %v81
    %v97 = vand.u32 2147483647, %v81
    %vm98 = vcmp.lt.f32.partialorder %v97, 0.0004427343
    %v99 = vsel %vm98, %v96, %v93
    %v100 = vadd.f32 %v72, %v90
    %v101 = vadd.f32 %v73, %v99
    %v102 = vld [vmem:[#allocation7] sm:$0xff]
    %v103 = vld [vmem:[#allocation7 + $0x8] sm:$0xff]
    %v104 = vadd.f32 %v100, 0.0
    %v105 = vadd.f32 %v101, 0.0
    %v106 = vadd.f32 %v102, %v104
    %v107 = vadd.f32 %v103, %v105
    %108 = vst [vmem:[#allocation7] sm:$0xff] %v106
    %109 = vst [vmem:[#allocation7 + $0x8] sm:$0xff] %v107
    // Predicated region
    $region22: #{tpu_custom_call.1} parent=1 // pred_check
      _
    $region23: #{tpu_custom_call.1} parent=1 // pred_check_branch
      %111 = sbr.rel (0) target = $region25
    $region24: #{tpu_custom_call.1} parent=1 // pred_region
      %113 = vsyncadd [#allocation4], 0
      %s115 = sshll.u32 [#allocation7], 4
      %s116 = int_to_ptr.vmem [resolvable:$true] %s115
      %s117 = sshll.u32 %s2, 4
      %s118 = int_to_ptr.hbm [resolvable:$true] %s117
      %120 = dma.vmem_to_hbm [thread:$0]  %s116, 256, %s118, [#allocation4]
    $region25: #{tpu_custom_call.1} parent=1 // pred_fallthru
      _
    // Predicated region
    $region26: #{tpu_custom_call.1} parent=1 // pred_check
      _
    $region27: #{tpu_custom_call.1} parent=1 // pred_check_branch
      %122 = sbr.rel (0) target = $region29
    $region28: #{tpu_custom_call.1} parent=1 // pred_region
      %124 = dma.done [#allocation4], 256
    $region29: #{tpu_custom_call.1} parent=1 // pred_fallthru
      _
    %125 = vsyncpa [#allocation3], 1
    %126 = vsyncpa [#allocation6], 1
    %127 = vsyncpa [#allocation4], 1

</llo_original>
